<compile_context>
chip_gen: v5e
topology: v5e:2x2
jax: 0.10.0
libtpu: 0.0.40
codegen_flags: <defaults>
</compile_context>

<pallas_src>
import functools

import jax
import jax.numpy as jnp
from jax.experimental import pallas as pl
from jax.experimental.pallas import tpu as pltpu


def _round_up(x, m):
    return ((x + m - 1) // m) * m


def _ce_pair_kernel(a_ref, p_ref, lab_ref, out_ref, acc_ref, *,
                    n_valid, n_classes, row_tile, chunk, n_chunks,
                    tiles_per_split, inv_n):
    """One grid step: accumulate CE losses for `row_tile` rows of both branches.

    a_ref / p_ref : (row_tile, C)   logits tiles (native dtype, unpadded C)
    lab_ref       : (row_tile, 2)   int32 labels (col 0 anchor, col 1 positive)
    out_ref       : (1, 128) f32    per-split partial sum (written on last step)
    acc_ref       : (1, 128) f32    single-vreg running accumulator
    """
    split = pl.program_id(0)
    step = pl.program_id(1)

    @pl.when(step == 0)
    def _():
        acc_ref[...] = jnp.zeros_like(acc_ref)

    block_row0 = (split * tiles_per_split + step) * row_tile

    def chunk_body(ci, carry):
        cs = pl.multiple_of(ci * chunk, chunk)
        rows = block_row0 + cs + jax.lax.broadcasted_iota(jnp.int32, (chunk, 1), 0)
        valid = rows < n_valid                       # masks partial / padded tiles

        labels = lab_ref[pl.ds(cs, chunk), :]        # (chunk, 2) int32
        col = jax.lax.broadcasted_iota(jnp.int32, (chunk, n_classes), 1)

        def branch_loss(logits_ref, lab_col):
            x = logits_ref[pl.ds(cs, chunk), :]      # (chunk, C), native dtype
            m = jnp.max(x, axis=-1, keepdims=True)   # row max in native dtype
            shifted = x.astype(jnp.float32) - m.astype(jnp.float32)
            sumexp = jnp.sum(jnp.exp(shifted), axis=-1, keepdims=True)
            picked = jnp.sum(jnp.where(col == lab_col, shifted, 0.0),
                             axis=-1, keepdims=True)
            loss = jnp.log(sumexp) - picked          # == lse(x) - x[label]
            return jnp.where(valid, loss, 0.0)       # (chunk, 1)

        losses = (branch_loss(a_ref, labels[:, 0:1])
                  + branch_loss(p_ref, labels[:, 1:2]))
        return carry + jnp.sum(losses)

    total = jax.lax.fori_loop(0, n_chunks, chunk_body, jnp.zeros((), jnp.float32))
    acc_ref[...] += total                            # single-vreg accumulator

    @pl.when(step == pl.num_programs(1) - 1)
    def _():
        out_ref[...] = acc_ref[...] * inv_n          # per-split partial / N


def temporal_consistency_val_loss(
    anchor_predicts,
    positive_predicts,
    anchor_features,    # unused (signature parity with the PyTorch module)
    positive_features,  # unused
    anchor_labels,
    positive_labels,
    indexs=None,        # unused
):
    del anchor_features, positive_features, indexs

    n, c = anchor_predicts.shape
    assert positive_predicts.shape == (n, c)
    dtype = anchor_predicts.dtype
    itemsize = jnp.dtype(dtype).itemsize

    sub = max(8, 32 // itemsize)            # sublane packing: 8 f32, 16 bf16
    c_lanes = _round_up(c, 128)             # lane-padded width (VMEM layout only)

    # --- inner row-chunk: keep per-chunk f32 temps around ~16 vregs --------
    chunk = max(sub, ((16 * 1024 // c_lanes) // sub) * sub)
    chunk = min(chunk, 512)

    # --- VMEM budget for the double-buffered input blocks ------------------
    try:
        vmem_cap = pltpu.get_tpu_info().vmem_capacity_bytes
    except Exception:
        vmem_cap = 64 * 1024 * 1024         # v7x per-TensorCore floor
    pipeline_budget = int(vmem_cap * 0.45)

    # VMEM bytes per row for ONE buffer set (2 logits blocks + label block).
    bytes_per_row = 2 * c_lanes * itemsize + 128 * 4
    rows_budget = max(chunk, pipeline_budget // (2 * bytes_per_row))
    rows_target = max(chunk, (4 * 1024 * 1024) // max(1, c * itemsize))  # ~4 MiB HBM/step

    if n <= chunk:
        # Tiny batch: one full-extent block, single grid step (always legal).
        row_tile, chunk, num_splits = n, n, 1
    else:
        row_tile = min(rows_budget, rows_target, (n // chunk) * chunk)
        row_tile = max(chunk, (row_tile // chunk) * chunk)
        num_splits = 2 if pl.cdiv(n, row_tile) >= 2 else 1

    tiles_total = pl.cdiv(n, row_tile)
    tiles_per_split = pl.cdiv(tiles_total, num_splits)
    n_chunks = row_tile // chunk
    n_rows_pad = num_splits * tiles_per_split * row_tile

    # --- labels: stack both branches into one tiny (N, 2) int32 array ------
    labels = jnp.stack(
        [anchor_labels.reshape(n).astype(jnp.int32),
         positive_labels.reshape(n).astype(jnp.int32)], axis=-1)
    if n_rows_pad > n:
        labels = jnp.pad(labels, ((0, n_rows_pad - n), (0, 0)))

    kernel = functools.partial(
        _ce_pair_kernel,
        n_valid=int(n), n_classes=int(c), row_tile=int(row_tile),
        chunk=int(chunk), n_chunks=int(n_chunks),
        tiles_per_split=int(tiles_per_split), inv_n=float(1.0 / n))

    last_block = tiles_total - 1            # clamp: never issue a fully-OOB DMA

    def logits_map(s, i):
        return (jnp.minimum(s * tiles_per_split + i, last_block), 0)

    def labels_map(s, i):
        return (s * tiles_per_split + i, 0)  # labels padded to n_rows_pad rows

    logits_spec = pl.BlockSpec((row_tile, c), logits_map)
    labels_spec = pl.BlockSpec((row_tile, 2), labels_map)
    out_spec = pl.BlockSpec((1, 128), lambda s, i: (0, s))

    # --- VMEM limit: what we actually use + headroom for compiler temps ----
    logits_block_b = _round_up(row_tile, sub) * c_lanes * itemsize
    labels_block_b = _round_up(row_tile, 8) * 128 * 4
    vmem_used = 2 * (2 * logits_block_b + labels_block_b) + 4 * 4096
    vmem_limit = int(min(vmem_cap * 0.9, vmem_used + (8 << 20)))
    vmem_limit = max(vmem_limit, 16 << 20)

    cost = pl.CostEstimate(
        flops=int(2 * 6 * n * c),
        transcendentals=int(2 * n * c),
        bytes_accessed=int(2 * n * c * itemsize + n * 8 + num_splits * 512),
    )

    out = pl.pallas_call(
        kernel,
        out_shape=jax.ShapeDtypeStruct((1, num_splits * 128), jnp.float32),
        grid_spec=pltpu.PrefetchScalarGridSpec(
            num_scalar_prefetch=0,
            grid=(num_splits, tiles_per_split),
            in_specs=[logits_spec, logits_spec, labels_spec],
            out_specs=out_spec,
            scratch_shapes=[pltpu.VMEM((1, 128), jnp.float32)],
        ),
        compiler_params=pltpu.CompilerParams(
            dimension_semantics=("parallel", "arbitrary"),
            vmem_limit_bytes=vmem_limit,
        ),
        cost_estimate=cost,
    )(anchor_predicts, positive_predicts, labels)

    # Per-split partial sums live in lane 0 of each 128-lane block.
    return jnp.sum(out[0, 0::128])


def _reference_loss(a_pred, p_pred, a_lab, p_lab):
    """Pure-JAX reference matching torch.nn.CrossEntropyLoss (mean) x2."""
    def ce(logits, labels):
        logits = logits.astype(jnp.float32)
        lse = jax.nn.logsumexp(logits, axis=-1)
        picked = jnp.take_along_axis(logits, labels[:, None], axis=-1)[:, 0]
        return jnp.mean(lse - picked)
    return ce(a_pred, a_lab) + ce(p_pred, p_lab)


if __name__ == "__main__":
    key = jax.random.PRNGKey(0)
    k1, k2, k3, k4, k5, k6 = jax.random.split(key, 6)

    batch = 8          # N per branch
    num_classes = 32   # deliberately not a multiple of 128 (no wrapper padding)
    feat_dim = 64

    anchor_predicts = jax.random.normal(k1, (batch, num_classes), jnp.float32)
    positive_predicts = jax.random.normal(k2, (batch, num_classes), jnp.float32)
    anchor_features = jax.random.normal(k3, (batch, feat_dim), jnp.float32)
    positive_features = jax.random.normal(k4, (batch, feat_dim), jnp.float32)
    anchor_labels = jax.random.randint(k5, (batch,), 0, num_classes, jnp.int32)
    positive_labels = jax.random.randint(k6, (batch,), 0, num_classes, jnp.int32)
    indexs = jnp.arange(batch, dtype=jnp.int32)  # unused by the forward pass

    loss = temporal_consistency_val_loss(
        anchor_predicts, positive_predicts,
        anchor_features, positive_features,
        anchor_labels, positive_labels,
        indexs,
    )
    loss = jax.block_until_ready(loss)

    ref = _reference_loss(anchor_predicts, positive_predicts,
                          anchor_labels, positive_labels)
    assert jnp.allclose(loss, ref, rtol=1e-5, atol=1e-5), (loss, ref)

    print("KERNEL_OK")
</pallas_src>

<mosaic_0001>
module attributes {stable_mosaic.version = 11 : i64} {
  func.func @_ce_pair_kernel(%arg0: i32, %arg1: i32, %arg2: memref<8x32xf32, #tpu.memory_space<vmem>>, %arg3: memref<8x32xf32, #tpu.memory_space<vmem>>, %arg4: memref<8x2xi32, #tpu.memory_space<vmem>>, %arg5: memref<1x128xf32, #tpu.memory_space<vmem>>, %arg6: memref<1x128xf32, #tpu.memory_space<vmem>>) attributes {dimension_semantics = [#tpu.dimension_semantics<parallel>, #tpu.dimension_semantics<arbitrary>], iteration_bounds = array<i64: 1, 1>, scalar_prefetch = 0 : i64, scratch_operands = 1 : i64, tpu.core_type = #tpu.core_type<tc>, window_params = [{transform_indices = @transform_0, window_bounds = array<i64: 8, 32>}, {transform_indices = @transform_1, window_bounds = array<i64: 8, 32>}, {transform_indices = @transform_2, window_bounds = array<i64: 8, 2>}, {transform_indices = @transform_3, window_bounds = array<i64: 1, 128>}]} {
    %c0_i32 = arith.constant 0 : i32
    %0 = arith.cmpi eq, %arg1, %c0_i32 : i32
    %1 = arith.extui %0 : i1 to i32
    %c0_i32_0 = arith.constant 0 : i32
    %2 = arith.cmpi ne, %1, %c0_i32_0 : i32
    scf.if %2 {
      %cst_24 = arith.constant 0.000000e+00 : f32
      %70 = vector.broadcast %cst_24 : f32 to vector<1x128xf32>
      %c0_25 = arith.constant 0 : index
      %c0_26 = arith.constant 0 : index
      %71 = vector.load %arg6[%c0_25, %c0_26] : memref<1x128xf32, #tpu.memory_space<vmem>>, vector<1x128xf32>
      tpu.vector_store %arg6[%c0_25, %c0_26], %70 {strides = array<i32>} : memref<1x128xf32, #tpu.memory_space<vmem>>, vector<1x128xf32>,
    } else {
    }
    %c1_i32 = arith.constant 1 : i32
    %3 = arith.muli %arg0, %c1_i32 : i32
    %4 = arith.addi %3, %arg1 : i32
    %c8_i32 = arith.constant 8 : i32
    %5 = arith.muli %4, %c8_i32 : i32
    %cst = arith.constant 0.000000e+00 : f32
    %c0_i32_1 = arith.constant 0 : i32
    %c8_i32_2 = arith.constant 8 : i32
    %6 = arith.muli %c0_i32_1, %c8_i32_2 : i32
    %7 = tpu.assume_multiple %6, 8 : i32
    %8 = arith.addi %5, %7 : i32
    %9 = tpu.iota {dimensions = array<i32: 0>} : vector<8x1xi32>
    %10 = vector.broadcast %8 : i32 to vector<8x1xi32>
    %11 = arith.addi %10, %9 : vector<8x1xi32>
    %c8_i32_3 = arith.constant 8 : i32
    %12 = vector.broadcast %c8_i32_3 : i32 to vector<8x1xi32>
    %13 = arith.cmpi slt, %11, %12 : vector<8x1xi32>
    %14 = arith.index_cast %7 : i32 to index
    %c0 = arith.constant 0 : index
    %15 = vector.load %arg4[%14, %c0] : memref<8x2xi32, #tpu.memory_space<vmem>>, vector<8x2xi32>
    %16 = tpu.iota {dimensions = array<i32: 1>} : vector<8x32xi32>
    %17 = vector.extract_strided_slice %15 {offsets = [0, 0], sizes = [8, 1], strides = [1, 1]} : vector<8x2xi32> to vector<8x1xi32>
    %18 = arith.index_cast %7 : i32 to index
    %c0_4 = arith.constant 0 : index
    %19 = vector.load %arg2[%18, %c0_4] : memref<8x32xf32, #tpu.memory_space<vmem>>, vector<8x32xf32>
    %cst_5 = arith.constant dense<0xFF800000> : vector<8xf32>
    %20 = vector.multi_reduction <maximumf>, %19, %cst_5 [1] : vector<8x32xf32> to vector<8xf32>
    %21 = vector.shape_cast %20 : vector<8xf32> to vector<8x1xf32>
    %22 = vector.broadcast %21 : vector<8x1xf32> to vector<8x32xf32>
    %23 = arith.subf %19, %22 : vector<8x32xf32>
    %24 = math.exp %23 : vector<8x32xf32>
    %cst_6 = arith.constant dense<0.000000e+00> : vector<8xf32>
    %25 = vector.multi_reduction <add>, %24, %cst_6 [1] : vector<8x32xf32> to vector<8xf32>
    %26 = vector.shape_cast %25 : vector<8xf32> to vector<8x1xf32>
    %27 = vector.broadcast %17 : vector<8x1xi32> to vector<8x32xi32>
    %28 = arith.cmpi eq, %16, %27 : vector<8x32xi32>
    %cst_7 = arith.constant 0.000000e+00 : f32
    %29 = vector.broadcast %cst_7 : f32 to vector<8x32xf32>
    %30 = arith.select %28, %23, %29 : vector<8x32xi1>, vector<8x32xf32>
    %cst_8 = arith.constant dense<0.000000e+00> : vector<8xf32>
    %31 = vector.multi_reduction <add>, %30, %cst_8 [1] : vector<8x32xf32> to vector<8xf32>
    %32 = vector.shape_cast %31 : vector<8xf32> to vector<8x1xf32>
    %33 = math.log %26 : vector<8x1xf32>
    %34 = arith.subf %33, %32 : vector<8x1xf32>
    %cst_9 = arith.constant 0.000000e+00 : f32
    %35 = vector.broadcast %cst_9 : f32 to vector<8x1xf32>
    %36 = arith.select %13, %34, %35 : vector<8x1xi1>, vector<8x1xf32>
    %37 = vector.extract_strided_slice %15 {offsets = [0, 1], sizes = [8, 1], strides = [1, 1]} : vector<8x2xi32> to vector<8x1xi32>
    %38 = arith.index_cast %7 : i32 to index
    %c0_10 = arith.constant 0 : index
    %39 = vector.load %arg3[%38, %c0_10] : memref<8x32xf32, #tpu.memory_space<vmem>>, vector<8x32xf32>
    %cst_11 = arith.constant dense<0xFF800000> : vector<8xf32>
    %40 = vector.multi_reduction <maximumf>, %39, %cst_11 [1] : vector<8x32xf32> to vector<8xf32>
    %41 = vector.shape_cast %40 : vector<8xf32> to vector<8x1xf32>
    %42 = vector.broadcast %41 : vector<8x1xf32> to vector<8x32xf32>
    %43 = arith.subf %39, %42 : vector<8x32xf32>
    %44 = math.exp %43 : vector<8x32xf32>
    %cst_12 = arith.constant dense<0.000000e+00> : vector<8xf32>
    %45 = vector.multi_reduction <add>, %44, %cst_12 [1] : vector<8x32xf32> to vector<8xf32>
    %46 = vector.shape_cast %45 : vector<8xf32> to vector<8x1xf32>
    %47 = vector.broadcast %37 : vector<8x1xi32> to vector<8x32xi32>
    %48 = arith.cmpi eq, %16, %47 : vector<8x32xi32>
    %cst_13 = arith.constant 0.000000e+00 : f32
    %49 = vector.broadcast %cst_13 : f32 to vector<8x32xf32>
    %50 = arith.select %48, %43, %49 : vector<8x32xi1>, vector<8x32xf32>
    %cst_14 = arith.constant dense<0.000000e+00> : vector<8xf32>
    %51 = vector.multi_reduction <add>, %50, %cst_14 [1] : vector<8x32xf32> to vector<8xf32>
    %52 = vector.shape_cast %51 : vector<8xf32> to vector<8x1xf32>
    %53 = math.log %46 : vector<8x1xf32>
    %54 = arith.subf %53, %52 : vector<8x1xf32>
    %cst_15 = arith.constant 0.000000e+00 : f32
    %55 = vector.broadcast %cst_15 : f32 to vector<8x1xf32>
    %56 = arith.select %13, %54, %55 : vector<8x1xi1>, vector<8x1xf32>
    %57 = arith.addf %36, %56 : vector<8x1xf32>
    %58 = vector.shape_cast %57 : vector<8x1xf32> to vector<1x8x1xf32>
    %cst_16 = arith.constant dense<0.000000e+00> : vector<1xf32>
    %59 = vector.multi_reduction <add>, %58, %cst_16 [1, 2] : vector<1x8x1xf32> to vector<1xf32>
    %60 = vector.shape_cast %59 : vector<1xf32> to vector<1x1x1xf32>
    %61 = vector.extract %60[0, 0, 0] : f32 from vector<1x1x1xf32>
    %62 = arith.addf %cst, %61 : f32
    %c1_i32_17 = arith.constant 1 : i32
    %c0_18 = arith.constant 0 : index
    %c0_19 = arith.constant 0 : index
    %63 = vector.load %arg6[%c0_18, %c0_19] : memref<1x128xf32, #tpu.memory_space<vmem>>, vector<1x128xf32>
    %64 = vector.broadcast %62 : f32 to vector<1x128xf32>
    %65 = arith.addf %63, %64 : vector<1x128xf32>
    %c0_20 = arith.constant 0 : index
    %c0_21 = arith.constant 0 : index
    %66 = vector.load %arg6[%c0_20, %c0_21] : memref<1x128xf32, #tpu.memory_space<vmem>>, vector<1x128xf32>
    tpu.vector_store %arg6[%c0_20, %c0_21], %65 {strides = array<i32>} : memref<1x128xf32, #tpu.memory_space<vmem>>, vector<1x128xf32>,
    %c0_i32_22 = arith.constant 0 : i32
    %67 = arith.cmpi eq, %arg1, %c0_i32_22 : i32
    %68 = arith.extui %67 : i1 to i32
    %c0_i32_23 = arith.constant 0 : i32
    %69 = arith.cmpi ne, %68, %c0_i32_23 : i32
    scf.if %69 {
      %c0_24 = arith.constant 0 : index
      %c0_25 = arith.constant 0 : index
      %70 = vector.load %arg6[%c0_24, %c0_25] : memref<1x128xf32, #tpu.memory_space<vmem>>, vector<1x128xf32>
      %cst_26 = arith.constant 1.250000e-01 : f32
      %71 = vector.broadcast %cst_26 : f32 to vector<1x128xf32>
      %72 = arith.mulf %70, %71 : vector<1x128xf32>
      %c0_27 = arith.constant 0 : index
      %c0_28 = arith.constant 0 : index
      %73 = vector.load %arg5[%c0_27, %c0_28] : memref<1x128xf32, #tpu.memory_space<vmem>>, vector<1x128xf32>
      tpu.vector_store %arg5[%c0_27, %c0_28], %72 {strides = array<i32>} : memref<1x128xf32, #tpu.memory_space<vmem>>, vector<1x128xf32>,
    } else {
    }
    return
  }
  func.func @transform_0(%arg0: i32, %arg1: i32) -> (i32, i32) {
    %c1_i32 = arith.constant 1 : i32
    %0 = arith.muli %arg0, %c1_i32 : i32
    %1 = arith.addi %0, %arg1 : i32
    %c0_i32 = arith.constant 0 : i32
    %2 = arith.minsi %1, %c0_i32 : i32
    %c0_i32_0 = arith.constant 0 : i32
    %c0_i32_1 = arith.constant 0 : i32
    return %2, %c0_i32_0 : i32, i32
  }
  func.func @transform_1(%arg0: i32, %arg1: i32) -> (i32, i32) {
    %c1_i32 = arith.constant 1 : i32
    %0 = arith.muli %arg0, %c1_i32 : i32
    %1 = arith.addi %0, %arg1 : i32
    %c0_i32 = arith.constant 0 : i32
    %2 = arith.minsi %1, %c0_i32 : i32
    %c0_i32_0 = arith.constant 0 : i32
    %c0_i32_1 = arith.constant 0 : i32
    return %2, %c0_i32_0 : i32, i32
  }
  func.func @transform_2(%arg0: i32, %arg1: i32) -> (i32, i32) {
    %c1_i32 = arith.constant 1 : i32
    %0 = arith.muli %arg0, %c1_i32 : i32
    %1 = arith.addi %0, %arg1 : i32
    %c0_i32 = arith.constant 0 : i32
    %c0_i32_0 = arith.constant 0 : i32
    return %1, %c0_i32 : i32, i32
  }
  func.func @transform_3(%arg0: i32, %arg1: i32) -> (i32, i32) {
    %c0_i32 = arith.constant 0 : i32
    %c0_i32_0 = arith.constant 0 : i32
    return %c0_i32, %arg0 : i32, i32
  }
}

</mosaic_0001>

<llo_original>
// kernel: tpu_custom_call.1
$region0: #{tpu_custom_call.1}
  #allocation0 [shape = 'u32[]', space=smem, size = 0x4, offset = 0x4, fixed_abs, tag = 'smem constant byte address 0x4 - core index']
  #allocation1 [shape = 'u32[72,128]{1,0:T(1,128)}', space=vmem, size = 0x9000, scoped, tag = 'internal scratch']
  #allocation2 [shape = 'f32[1,128]{1,0:T(1,128)}', space=vmem, size = 0x200, scoped, tag = 'scratch operand']
  %s0 = inlined_call_operand.vmem [shape: f32[8,32], index: 0, kind: input, shape index: {}]
  %s1 = inlined_call_operand.hbm [shape: f32[8,32], index: 1, kind: input, shape index: {}]
  %s2 = inlined_call_operand.vmem [shape: s32[8,2], index: 2, kind: input, shape index: {}]
  %s3 = inlined_call_operand.hbm [shape: f32[1,128], index: 3, kind: output, shape index: {}]
  %s4 = sld [smem:[#allocation0]]
  $region34: #{tpu_custom_call.1} parent=0
    _
  %s6 = ssub.s32 1, %s4
  %s7 = scalar_select 0, %s6, %s4
  $region1: #{tpu_custom_call.1} parent=0
    #allocation3 [shape = 'u8[4096]{0}', space=vmem, size = 0x1000, scoped, tag = 'input window, operand 1, single buffered']
    #allocation4 [shape = 's32[1]{0}', space=sflag, size = 0x4, scoped, tag = 'scoped memory for tpu_custom_call.1']
    #allocation5 [shape = 's32[1]{0}', space=sflag, size = 0x4, scoped, tag = 'scoped memory for tpu_custom_call.1']
    #allocation6 [shape = 'u8[512]{0}', space=vmem, size = 0x400, scoped, tag = 'output window, operand 0, single buffered']
    %8 = vsyncpa [#allocation4], 0
    %9 = vsyncpa [#allocation5], 0
    // Predicated region
    $region2: #{tpu_custom_call.1} parent=1 // pred_check
      _
    $region3: #{tpu_custom_call.1} parent=1 // pred_check_branch
      %11 = sbr.rel (0) target = $region5
    $region4: #{tpu_custom_call.1} parent=1 // pred_region
      %s12 = sadd.s32 0, 0
      %p13 = scmp.lt.s32.totalorder %s12, 0
      %s14 = scalar_select %p13, %s12, 0
      %p15 = scmp.lt.s32.totalorder %s14, 0
      %s16 = scalar_select %p15, %s14, 0
      %s17 = smul.addr %s16, 8
      %s18 = scalar_lea.vmem %s0, %s17
      %s19 = sadd.s32 0, 0
      %p20 = scmp.lt.s32.totalorder %s19, 0
      %s21 = scalar_select %p20, %s19, 0
    $region5: #{tpu_custom_call.1} parent=1 // pred_fallthru
      _
    // Predicated region
    $region6: #{tpu_custom_call.1} parent=1 // pred_check
      _
    $region7: #{tpu_custom_call.1} parent=1 // pred_check_branch
      %23 = sbr.rel (0) target = $region9
    $region8: #{tpu_custom_call.1} parent=1 // pred_region
      %s24 = sadd.s32 0, 0
      %p25 = scmp.lt.s32.totalorder %s24, 0
      %s26 = scalar_select %p25, %s24, 0
      %28 = vsyncadd [#allocation4], 0
      %s29 = smul.addr %s26, 8
      %s30 = scalar_lea.hbm %s1, %s29
      %s32 = sshll.u32 %s30, 4
      %s33 = int_to_ptr.hbm [resolvable:$true] %s32
      %s34 = sshll.u32 [#allocation3], 4
      %s35 = int_to_ptr.vmem [resolvable:$true] %s34
      %37 = dma.hbm_to_vmem [thread:$0]  %s33, 128, %s35, [#allocation4]
    $region9: #{tpu_custom_call.1} parent=1 // pred_fallthru
      _
    // Predicated region
    $region10: #{tpu_custom_call.1} parent=1 // pred_check
      _
    $region11: #{tpu_custom_call.1} parent=1 // pred_check_branch
      %39 = sbr.rel (0) target = $region13
    $region12: #{tpu_custom_call.1} parent=1 // pred_region
      %s40 = sadd.s32 0, 0
      %p41 = scmp.lt.s32.totalorder %s40, 0
      %s42 = scalar_select %p41, %s40, 0
      %s43 = smul.addr %s42, 8
      %s44 = scalar_lea.vmem %s2, %s43
      %s45 = sadd.s32 0, 0
    $region13: #{tpu_custom_call.1} parent=1 // pred_fallthru
      _
    // Predicated region
    $region14: #{tpu_custom_call.1} parent=1 // pred_check
      _
    $region15: #{tpu_custom_call.1} parent=1 // pred_check_branch
      %47 = sbr.rel (0) target = $region17
    $region16: #{tpu_custom_call.1} parent=1 // pred_region
      %49 = dma.done [#allocation4], 128
    $region17: #{tpu_custom_call.1} parent=1 // pred_fallthru
      _
    %s50 = sadd.s32 0, 0
    %p51 = scmp.lt.s32.totalorder %s50, 0
    %s52 = scalar_select %p51, %s50, 0
    %p53 = scmp.lt.s32.totalorder %s52, 0
    %s54 = scalar_select %p53, %s52, 0
    %s55 = smul.addr %s54, 8
    %s56 = scalar_lea.vmem %s0, %s55
    %s57 = sadd.s32 0, 0
    %p58 = scmp.lt.s32.totalorder %s57, 0
    %s59 = scalar_select %p58, %s57, 0
    %s60 = smul.addr %s59, 8
    %s61 = scalar_lea.vmem %s2, %s60
    %s62 = sadd.s32 0, 0
    %p63 = scmp.lt.s32.totalorder %s62, 0
    %s64 = scalar_select %p63, %s62, 0
    %p65 = scmp.lt.s32.totalorder %s64, 0
    %s66 = scalar_select %p65, %s64, 0
    %s67 = smul.addr %s66, 8
    %s68 = scalar_lea.vmem %s0, %s67
    %s69 = sadd.s32 0, 0
    %p70 = scmp.lt.s32.totalorder %s69, 0
    %s71 = scalar_select %p70, %s69, 0
    %s72 = sadd.s32 0, 0
    %p73 = scmp.lt.s32.totalorder %s72, 0
    %s74 = scalar_select %p73, %s72, 0
    %s75 = sadd.s32 0, 0
    %p76 = scmp.lt.s32.totalorder %s75, 0
    %s77 = scalar_select %p76, %s75, 0
    %s78 = smul.addr %s77, 8
    %s79 = scalar_lea.vmem %s2, %s78
    %s80 = sadd.s32 0, 0
    %p81 = scmp.eq.s32.totalorder 0, 0
    // Predicated region
    $region18: #{tpu_custom_call.1} parent=1 // pred_check
      %p82 = pneg %p81
    $region19: #{tpu_custom_call.1} parent=1 // pred_check_branch
      %84 = sbr.rel (%p82) target = $region21
    $region20: #{tpu_custom_call.1} parent=1 // pred_region
      %85 = vst [vmem:[#allocation2] sm:$0x1] 0.0
    $region21: #{tpu_custom_call.1} parent=1 // pred_fallthru
      _
    %s86 = sadd.s32 0, 0
    %s87 = smul.u32 %s86, 8
    %s88 = sadd.s32 %s87, 0
    %v89 = vlaneseq
    %v90 = vshrl.u32 %v89, 7
    %v91 = vstv %s88
    %v92 = vadd.s32 %v91, %v90
    %vm93 = vcmp.lt.s32.totalorder %v92, 8
    %v94 = vld [vmem:[%s79] sm:$0xff]
    %v95 = vlaneseq
    %v96 = vand.u32 %v95, 127
    %v97 = vld [vmem:[%s68] sm:$0xff]
    %vm98 = vcmask 261120
    %v99 = vsel %vm98, %v97, -inf
    %100 = vmax.xlane.f32.xlu0 %v99
    %v101 = vpop.xlane.xlu0 %100
    %v102 = vsub.f32 %v97, %v101
    %v103 = vmul.f32 %v102, 1.442695
    %v104 = vpow.pop %v103
    %v105 = vsel %vm98, %v104, 0.0
    %106 = vadd.xlane.f32.xlu0 %v105
    %v107 = vpop.xlane.xlu0 %106
    %108 = vset.pattern.permute.xlu0 0
    %109 = vperm.xlu0 %108, %v94
    %v110 = vpop.permute.xlu0 %109
    %vm111 = vcmp.eq.s32.totalorder %v96, %v110
    %v112 = vsel %vm111, %v102, 0.0
    %v113 = vsel %vm98, %v112, 0.0
    %114 = vadd.xlane.f32.xlu0 %v113
    %v115 = vpop.xlane.xlu0 %114
    %v116 = vlog2.pop %v107
    %v117 = vmul.f32 %v116, 0.6931472
    %v118 = vsub.f32 %v117, %v115
    %v119 = vsel %vm93, %v118, 0.0
    %v120 = vld [vmem:[#allocation3] sm:$0xff]
    %v121 = vsel %vm98, %v120, -inf
    %122 = vmax.xlane.f32.xlu0 %v121
    %v123 = vpop.xlane.xlu0 %122
    %v124 = vsub.f32 %v120, %v123
    %v125 = vmul.f32 %v124, 1.442695
    %v126 = vpow.pop %v125
    %v127 = vsel %vm98, %v126, 0.0
    %128 = vadd.xlane.f32.xlu0 %v127
    %v129 = vpop.xlane.xlu0 %128
    %130 = vset.pattern.permute.xlu0 1
    %131 = vperm.xlu0 %130, %v94
    %v132 = vpop.permute.xlu0 %131
    %vm133 = vcmp.eq.s32.totalorder %v96, %v132
    %v134 = vsel %vm133, %v124, 0.0
    %v135 = vsel %vm98, %v134, 0.0
    %136 = vadd.xlane.f32.xlu0 %v135
    %v137 = vpop.xlane.xlu0 %136
    %v138 = vlog2.pop %v129
    %v139 = vmul.f32 %v138, 0.6931472
    %v140 = vsub.f32 %v139, %v137
    %v141 = vsel %vm93, %v140, 0.0
    %v142 = vadd.f32 %v119, %v141
    %vm143 = vcmask 7168
    %v144 = vsel %vm143, %v142, 0.0
    %145 = vadd.xlane.f32.xlu0 %v144
    %v146 = vpop.xlane.xlu0 %145
    %v147 = vrot.slane %v146, 4
    %v148 = vadd.f32 %v146, %v147
    %v149 = vrot.slane %v148, 2
    %v150 = vadd.f32 %v148, %v149
    %v151 = vrot.slane %v150, 1
    %v152 = vadd.f32 %v150, %v151
    %s153 = vtos %v152
    %s154 = sadd.f32 %s153, 0.0
    %v155 = vld [vmem:[#allocation2] sm:$0x1]
    %v156 = vstv %s154
    %v157 = vadd.f32 %v155, %v156
    %158 = vst [vmem:[#allocation2] sm:$0x1] %v157
    // Predicated region
    $region22: #{tpu_custom_call.1} parent=1 // pred_check
      %p159 = pneg %p81
    $region23: #{tpu_custom_call.1} parent=1 // pred_check_branch
      %161 = sbr.rel (%p159) target = $region25
    $region24: #{tpu_custom_call.1} parent=1 // pred_region
      %v162 = vld [vmem:[#allocation2] sm:$0x1]
      %v163 = vmul.f32 %v162, 0.125
      %164 = vst [vmem:[#allocation6] sm:$0x1] %v163
    $region25: #{tpu_custom_call.1} parent=1 // pred_fallthru
      _
    // Predicated region
    $region26: #{tpu_custom_call.1} parent=1 // pred_check
      _
    $region27: #{tpu_custom_call.1} parent=1 // pred_check_branch
      %166 = sbr.rel (0) target = $region29
    $region28: #{tpu_custom_call.1} parent=1 // pred_region
      %168 = vsyncadd [#allocation5], 0
      %s170 = sshll.u32 [#allocation6], 4
      %s171 = int_to_ptr.vmem [resolvable:$true] %s170
      %s172 = sshll.u32 %s3, 4
      %s173 = int_to_ptr.hbm [resolvable:$true] %s172
      %175 = dma.vmem_to_hbm [thread:$0]  %s171, 16, %s173, [#allocation5]
    $region29: #{tpu_custom_call.1} parent=1 // pred_fallthru
      _
    // Predicated region
    $region30: #{tpu_custom_call.1} parent=1 // pred_check
      _
    $region31: #{tpu_custom_call.1} parent=1 // pred_check_branch
      %177 = sbr.rel (0) target = $region33
    $region32: #{tpu_custom_call.1} parent=1 // pred_region
      %179 = dma.done [#allocation5], 16
    $region33: #{tpu_custom_call.1} parent=1 // pred_fallthru
      _
    %180 = vsyncpa [#allocation4], 1
    %181 = vsyncpa [#allocation5], 1

</llo_original>
